<compile_context>
chip_gen: v6e
topology: v6e:2x2x1
jax: 0.10.0
libtpu: 0.0.40
codegen_flags: <defaults>
</compile_context>

<pallas_src>
import functools

import jax
import jax.numpy as jnp
from jax.experimental import pallas as pl
from jax.experimental.pallas import tpu as pltpu


def _actor_kernel(x_ref, w1_ref, wcat_ref, bcat_ref, out_ref,
                  *, n_actions, hidden, head_pad):
    f32 = jnp.float32
    bf16 = jnp.bfloat16
    h = hidden

    # Layer 1: bf16 x bf16 -> f32 accumulate on the MXU, bias + ReLU in f32.
    x = x_ref[...].astype(bf16)
    a = jnp.dot(x, w1_ref[...], preferred_element_type=f32) + bcat_ref[:, 0:h]
    a = jnp.maximum(a, 0.0).astype(bf16)

    # Layer 2 (weight = static 128-aligned slice of the packed buffer).
    a = jnp.dot(a, wcat_ref[:, 0:h], preferred_element_type=f32) \
        + bcat_ref[:, h:2 * h]
    a = jnp.maximum(a, 0.0).astype(bf16)

    # Layer 3.
    a = jnp.dot(a, wcat_ref[:, h:2 * h], preferred_element_type=f32) \
        + bcat_ref[:, 2 * h:3 * h]
    a = jnp.maximum(a, 0.0).astype(bf16)

    # Fused, lane-dense head: lanes [0,n_actions) = pi,
    # [n_actions, 2*n_actions) = log_sigma, rest zero padding.
    head = jnp.dot(a, wcat_ref[:, 2 * h:2 * h + head_pad],
                   preferred_element_type=f32) \
        + bcat_ref[:, 3 * h:3 * h + head_pad]

    # Clamp only the log_sigma (and harmless zero-pad) lanes; pi stays free.
    lane = jax.lax.broadcasted_iota(jnp.int32, head.shape, 1)
    head = jnp.where(lane < n_actions, head, jnp.clip(head, -20.0, 2.0))

    out_ref[...] = head.astype(out_ref.dtype)


# Batch tile for the large-batch (grid) path.  Gridless below this.
_TILE_B = 512


@functools.partial(jax.jit, static_argnames=("n_actions",))
def actor_forward(x, packed_params, n_actions):
    """Fused ActorNetwork forward.  `packed_params` from pack_actor_params."""
    w1, wcat, bcat = packed_params
    batch, in_dim = x.shape
    hidden = w1.shape[1]
    head_pad = wcat.shape[1] - 2 * hidden
    assert head_pad >= 2 * n_actions

    kernel = functools.partial(_actor_kernel, n_actions=n_actions,
                               hidden=hidden, head_pad=head_pad)

    flops = 2 * batch * (in_dim * hidden + 2 * hidden * hidden
                         + hidden * head_pad)
    bytes_accessed = (
        x.size * x.dtype.itemsize
        + sum(int(a.size) * a.dtype.itemsize for a in packed_params)
        + batch * head_pad * 4)
    cost = pl.CostEstimate(flops=flops, transcendentals=0,
                           bytes_accessed=bytes_accessed)

    resident = pl.BlockSpec(memory_space=pltpu.MemorySpace.VMEM)

    if batch > _TILE_B:
        # Tiled path: cdiv grid + zero-padded last tile; weights stay resident
        # in VMEM (untiled spec, no double buffering / re-DMA); batch axis is
        # "parallel" so v7x's two TensorCores split it.
        n_tiles = pl.cdiv(batch, _TILE_B)
        padded = n_tiles * _TILE_B
        x_in = x if padded == batch else jnp.pad(x, ((0, padded - batch), (0, 0)))
        out = pl.pallas_call(
            kernel,
            out_shape=jax.ShapeDtypeStruct((padded, head_pad), jnp.float32),
            grid=(n_tiles,),
            in_specs=[pl.BlockSpec((_TILE_B, in_dim), lambda i: (i, 0)),
                      resident, resident, resident],
            out_specs=pl.BlockSpec((_TILE_B, head_pad), lambda i: (i, 0)),
            compiler_params=pltpu.CompilerParams(
                dimension_semantics=("parallel",)),
            cost_estimate=cost,
        )(x_in, w1, wcat, bcat)
        out = out[:batch]
    else:
        # Small-batch path: grid-less, everything VMEM-resident (<~2.5 MiB even
        # at batch == _TILE_B, far under every generation's scoped limit).
        out = pl.pallas_call(
            kernel,
            out_shape=jax.ShapeDtypeStruct((batch, head_pad), jnp.float32),
            in_specs=[resident] * 4,
            out_specs=resident,
            cost_estimate=cost,
        )(x, w1, wcat, bcat)

    pi = out[:, :n_actions]
    log_sigma = out[:, n_actions:2 * n_actions]
    return pi, log_sigma


def _xavier_uniform(key, fan_in, fan_out, dtype=jnp.float32):
    # Matches torch.nn.init.xavier_uniform_ with gain=1.
    bound = (6.0 / (fan_in + fan_out)) ** 0.5
    return jax.random.uniform(key, (fan_in, fan_out), dtype=dtype,
                              minval=-bound, maxval=bound)


def init_actor_params(key, input_dims, n_actions,
                      fc1_dims=256, fc2_dims=256, fc3_dims=256):
    """PyTorch-equivalent parameters (weights as (in, out), biases zero)."""
    k1, k2, k3, k4, k5 = jax.random.split(key, 5)
    w1 = _xavier_uniform(k1, input_dims, fc1_dims)
    b1 = jnp.zeros((1, fc1_dims), jnp.float32)
    w2 = _xavier_uniform(k2, fc1_dims, fc2_dims)
    b2 = jnp.zeros((1, fc2_dims), jnp.float32)
    w3 = _xavier_uniform(k3, fc2_dims, fc3_dims)
    b3 = jnp.zeros((1, fc3_dims), jnp.float32)
    wpi = _xavier_uniform(k4, fc3_dims, n_actions)
    bpi = jnp.zeros((1, n_actions), jnp.float32)
    wls = _xavier_uniform(k5, fc3_dims, n_actions)
    bls = jnp.zeros((1, n_actions), jnp.float32)
    return (w1, b1, w2, b2, w3, b3, wpi, bpi, wls, bls)


def pack_actor_params(params, weights_dtype=jnp.bfloat16):
    """One-time repack (outside the step loop):

      * weights cast to bf16 (native MXU input dtype on v5e/v6e/v7x),
      * pi/log_sigma heads fused and lane-padded to a 128-lane multiple,
      * w2 | w3 | head packed into ONE buffer, all biases into ONE buffer,
        so the kernel issues 4 input DMAs instead of 9.
    Returns (w1_bf16, wcat_bf16, bcat_f32).
    """
    w1, b1, w2, b2, w3, b3, wpi, bpi, wls, bls = params
    h1, h2, h3 = w1.shape[1], w2.shape[1], w3.shape[1]
    assert h1 == h2 == h3, "packed layout assumes fc1_dims == fc2_dims == fc3_dims"

    n_actions = wpi.shape[1]
    head_width = 2 * n_actions
    head_pad = max(128, ((head_width + 127) // 128) * 128)

    wh = jnp.concatenate([wpi, wls], axis=1)
    bh = jnp.concatenate([bpi, bls], axis=1)
    wh = jnp.pad(wh, ((0, 0), (0, head_pad - head_width)))
    bh = jnp.pad(bh, ((0, 0), (0, head_pad - head_width)))

    wcat = jnp.concatenate([w2, w3, wh], axis=1).astype(weights_dtype)
    bcat = jnp.concatenate([b1, b2, b3, bh], axis=1).astype(jnp.float32)
    return (w1.astype(weights_dtype), wcat, bcat)


def _reference_forward(x, params):
    # Pure-JAX reference of the same math with the same dtype path the kernel
    # uses (bf16 matmul operands, f32 accumulation / bias / ReLU), so only
    # accumulation order can differ.
    w1, b1, w2, b2, w3, b3, wpi, bpi, wls, bls = params
    bf = lambda a: a.astype(jnp.bfloat16)

    def dense(h, w, b):
        return jnp.dot(bf(h), bf(w), preferred_element_type=jnp.float32) + b

    h = jnp.maximum(dense(x, w1, b1), 0.0)
    h = jnp.maximum(dense(h, w2, b2), 0.0)
    h = jnp.maximum(dense(h, w3, b3), 0.0)
    pi = dense(h, wpi, bpi)
    ls = jnp.clip(dense(h, wls, bls), -20.0, 2.0)
    return pi, ls


if __name__ == "__main__":
    key = jax.random.PRNGKey(0)
    k_params, k_state, k_big = jax.random.split(key, 3)

    batch = 8
    input_dims = 16      # state dimensionality
    n_actions = 8
    hidden = 256         # fc1_dims = fc2_dims = fc3_dims (module defaults)

    params = init_actor_params(k_params, input_dims, n_actions,
                               fc1_dims=hidden, fc2_dims=hidden, fc3_dims=hidden)
    packed = pack_actor_params(params)
    state = jax.random.normal(k_state, (batch, input_dims), jnp.float32)

    # Small-batch (gridless) path.
    pi, log_sigma = actor_forward(state, packed, n_actions=n_actions)
    jax.block_until_ready((pi, log_sigma))

    pi_ref, ls_ref = _reference_forward(state, params)
    assert pi.shape == (batch, n_actions)
    assert log_sigma.shape == (batch, n_actions)
    assert jnp.allclose(pi, pi_ref, atol=2e-3, rtol=2e-3)
    assert jnp.allclose(log_sigma, ls_ref, atol=2e-3, rtol=2e-3)
    assert float(jnp.max(log_sigma)) <= 2.0 and float(jnp.min(log_sigma)) >= -20.0

    # Tiled (grid, padded-last-tile, megacore-parallel) path.
    big_batch = 640      # > _TILE_B and not a multiple of it -> exercises padding
    big_state = jax.random.normal(k_big, (big_batch, input_dims), jnp.float32)
    pi_b, ls_b = actor_forward(big_state, packed, n_actions=n_actions)
    jax.block_until_ready((pi_b, ls_b))
    pi_b_ref, ls_b_ref = _reference_forward(big_state, params)
    assert pi_b.shape == (big_batch, n_actions)
    assert ls_b.shape == (big_batch, n_actions)
    assert jnp.allclose(pi_b, pi_b_ref, atol=2e-3, rtol=2e-3)
    assert jnp.allclose(ls_b, ls_b_ref, atol=2e-3, rtol=2e-3)

    print("KERNEL_OK")
</pallas_src>

<mosaic_0001>
module attributes {stable_mosaic.version = 11 : i64} {
  func.func @_actor_kernel(%arg0: memref<8x16xf32, #tpu.memory_space<vmem>>, %arg1: memref<16x256xbf16, #tpu.memory_space<vmem>>, %arg2: memref<256x640xbf16, #tpu.memory_space<vmem>>, %arg3: memref<1x896xf32, #tpu.memory_space<vmem>>, %arg4: memref<8x128xf32, #tpu.memory_space<vmem>>) attributes {dimension_semantics = [], scalar_prefetch = 0 : i64, scratch_operands = 0 : i64, tpu.core_type = #tpu.core_type<tc>} {
    %c0 = arith.constant 0 : index
    %c0_0 = arith.constant 0 : index
    %0 = vector.load %arg0[%c0, %c0_0] : memref<8x16xf32, #tpu.memory_space<vmem>>, vector<8x16xf32>
    %1 = arith.truncf %0 : vector<8x16xf32> to vector<8x16xbf16>
    %c0_1 = arith.constant 0 : index
    %c0_2 = arith.constant 0 : index
    %2 = vector.load %arg1[%c0_1, %c0_2] : memref<16x256xbf16, #tpu.memory_space<vmem>>, vector<16x256xbf16>
    %cst = arith.constant dense<0.000000e+00> : vector<8x256xf32>
    %3 = tpu.matmul %1, %2, %cst {dimension_numbers = #tpu.dot_dimension_numbers<[1], [0], [0], [1], [0, 0, 1, 1], [], []>} : vector<8x16xbf16>, vector<16x256xbf16>, vector<8x256xf32> -> vector<8x256xf32>
    %c0_3 = arith.constant 0 : index
    %c0_4 = arith.constant 0 : index
    %4 = vector.load %arg3[%c0_3, %c0_4] : memref<1x896xf32, #tpu.memory_space<vmem>>, vector<1x256xf32>
    %5 = vector.broadcast %4 : vector<1x256xf32> to vector<8x256xf32>
    %6 = arith.addf %3, %5 : vector<8x256xf32>
    %cst_5 = arith.constant 0.000000e+00 : f32
    %7 = vector.broadcast %cst_5 : f32 to vector<8x256xf32>
    %8 = arith.maximumf %6, %7 : vector<8x256xf32>
    %9 = arith.truncf %8 : vector<8x256xf32> to vector<8x256xbf16>
    %c0_6 = arith.constant 0 : index
    %c0_7 = arith.constant 0 : index
    %10 = vector.load %arg2[%c0_6, %c0_7] : memref<256x640xbf16, #tpu.memory_space<vmem>>, vector<256x256xbf16>
    %cst_8 = arith.constant dense<0.000000e+00> : vector<8x256xf32>
    %11 = tpu.matmul %9, %10, %cst_8 {dimension_numbers = #tpu.dot_dimension_numbers<[1], [0], [0], [1], [0, 0, 1, 1], [], []>} : vector<8x256xbf16>, vector<256x256xbf16>, vector<8x256xf32> -> vector<8x256xf32>
    %c0_9 = arith.constant 0 : index
    %c256 = arith.constant 256 : index
    %12 = vector.load %arg3[%c0_9, %c256] : memref<1x896xf32, #tpu.memory_space<vmem>>, vector<1x256xf32>
    %13 = vector.broadcast %12 : vector<1x256xf32> to vector<8x256xf32>
    %14 = arith.addf %11, %13 : vector<8x256xf32>
    %cst_10 = arith.constant 0.000000e+00 : f32
    %15 = vector.broadcast %cst_10 : f32 to vector<8x256xf32>
    %16 = arith.maximumf %14, %15 : vector<8x256xf32>
    %17 = arith.truncf %16 : vector<8x256xf32> to vector<8x256xbf16>
    %c0_11 = arith.constant 0 : index
    %c256_12 = arith.constant 256 : index
    %18 = vector.load %arg2[%c0_11, %c256_12] : memref<256x640xbf16, #tpu.memory_space<vmem>>, vector<256x256xbf16>
    %cst_13 = arith.constant dense<0.000000e+00> : vector<8x256xf32>
    %19 = tpu.matmul %17, %18, %cst_13 {dimension_numbers = #tpu.dot_dimension_numbers<[1], [0], [0], [1], [0, 0, 1, 1], [], []>} : vector<8x256xbf16>, vector<256x256xbf16>, vector<8x256xf32> -> vector<8x256xf32>
    %c0_14 = arith.constant 0 : index
    %c512 = arith.constant 512 : index
    %20 = vector.load %arg3[%c0_14, %c512] : memref<1x896xf32, #tpu.memory_space<vmem>>, vector<1x256xf32>
    %21 = vector.broadcast %20 : vector<1x256xf32> to vector<8x256xf32>
    %22 = arith.addf %19, %21 : vector<8x256xf32>
    %cst_15 = arith.constant 0.000000e+00 : f32
    %23 = vector.broadcast %cst_15 : f32 to vector<8x256xf32>
    %24 = arith.maximumf %22, %23 : vector<8x256xf32>
    %25 = arith.truncf %24 : vector<8x256xf32> to vector<8x256xbf16>
    %c0_16 = arith.constant 0 : index
    %c512_17 = arith.constant 512 : index
    %26 = vector.load %arg2[%c0_16, %c512_17] : memref<256x640xbf16, #tpu.memory_space<vmem>>, vector<256x128xbf16>
    %cst_18 = arith.constant dense<0.000000e+00> : vector<8x128xf32>
    %27 = tpu.matmul %25, %26, %cst_18 {dimension_numbers = #tpu.dot_dimension_numbers<[1], [0], [0], [1], [0, 0, 1, 1], [], []>} : vector<8x256xbf16>, vector<256x128xbf16>, vector<8x128xf32> -> vector<8x128xf32>
    %c0_19 = arith.constant 0 : index
    %c768 = arith.constant 768 : index
    %28 = vector.load %arg3[%c0_19, %c768] : memref<1x896xf32, #tpu.memory_space<vmem>>, vector<1x128xf32>
    %29 = vector.broadcast %28 : vector<1x128xf32> to vector<8x128xf32>
    %30 = arith.addf %27, %29 : vector<8x128xf32>
    %31 = tpu.iota {dimensions = array<i32: 1>} : vector<8x128xi32>
    %c8_i32 = arith.constant 8 : i32
    %32 = vector.broadcast %c8_i32 : i32 to vector<8x128xi32>
    %33 = arith.cmpi slt, %31, %32 : vector<8x128xi32>
    %cst_20 = arith.constant -2.000000e+01 : f32
    %cst_21 = arith.constant 2.000000e+00 : f32
    %34 = vector.broadcast %cst_20 : f32 to vector<8x128xf32>
    %35 = arith.maximumf %34, %30 : vector<8x128xf32>
    %36 = vector.broadcast %cst_21 : f32 to vector<8x128xf32>
    %37 = arith.minimumf %36, %35 : vector<8x128xf32>
    %38 = arith.select %33, %30, %37 : vector<8x128xi1>, vector<8x128xf32>
    %c0_22 = arith.constant 0 : index
    %c0_23 = arith.constant 0 : index
    %39 = vector.load %arg4[%c0_22, %c0_23] : memref<8x128xf32, #tpu.memory_space<vmem>>, vector<8x128xf32>
    tpu.vector_store %arg4[%c0_22, %c0_23], %38 {strides = array<i32>} : memref<8x128xf32, #tpu.memory_space<vmem>>, vector<8x128xf32>,
    return
  }
}

</mosaic_0001>

<llo_original>
// kernel: actor_forward.1
$region0: #{actor_forward.1}
  #allocation0 [shape = 'u32[]', space=smem, size = 0x4, offset = 0x4, fixed_abs, tag = 'smem constant byte address 0x4 - core index']
  #allocation1 [shape = 'u32[144,128]{1,0:T(1,128)}', space=vmem, size = 0x12000, scoped, tag = 'internal scratch']
  %s0 = inlined_call_operand.hbm [shape: f32[8,16], index: 0, kind: input, shape index: {}]
  %s1 = inlined_call_operand.hbm [shape: bf16[16,256], index: 1, kind: input, shape index: {}]
  %s2 = inlined_call_operand.hbm [shape: bf16[256,640], index: 2, kind: input, shape index: {}]
  %s3 = inlined_call_operand.hbm [shape: f32[1,896], index: 3, kind: input, shape index: {}]
  %s4 = inlined_call_operand.vmem [shape: f32[8,128], index: 4, kind: output, shape index: {}]
  %s5 = sld [smem:[#allocation0]]
  $region42: #{actor_forward.1} parent=0
    _
  %s7 = ssub.s32 1, %s5
  %s8 = scalar_select 0, %s7, %s5
  $region1: #{actor_forward.1} parent=0
    #allocation2 [shape = 'u8[4096]{0}', space=vmem, size = 0x1000, scoped, tag = 'input window, operand 0, single buffered']
    #allocation3 [shape = 's32[1]{0}', space=sflag, size = 0x4, scoped, tag = 'scoped memory for actor_forward.1']
    #allocation4 [shape = 'u8[8192]{0}', space=vmem, size = 0x2000, scoped, tag = 'input window, operand 1, single buffered']
    #allocation5 [shape = 's32[1]{0}', space=sflag, size = 0x4, scoped, tag = 'scoped memory for actor_forward.1']
    #allocation6 [shape = 'u8[327680]{0}', space=vmem, size = 0x50000, scoped, tag = 'input window, operand 2, single buffered']
    #allocation7 [shape = 'u8[3584]{0}', space=vmem, size = 0x1000, scoped, tag = 'input window, operand 3, single buffered']
    #allocation8 [shape = 's32[1]{0}', space=sflag, size = 0x4, scoped, tag = 'scoped memory for actor_forward.1']
    %9 = vsyncpa [#allocation3], 0
    %10 = vsyncpa [#allocation5], 0
    %11 = vsyncpa [#allocation8], 0
    // Predicated region
    $region2: #{actor_forward.1} parent=1 // pred_check
      _
    $region3: #{actor_forward.1} parent=1 // pred_check_branch
      %13 = sbr.rel (0) target = $region5
    $region4: #{actor_forward.1} parent=1 // pred_region
      %s15 = ssub.s32 128, 128
      %16 = vsyncadd [#allocation3], %s15
      %s18 = sshll.u32 [#allocation2], 4
      %s19 = int_to_ptr.vmem [resolvable:$true] %s18
      %21 = dma.hbm_to_vmem [thread:$0]  %s0, 128, %s19, [#allocation3]
    $region5: #{actor_forward.1} parent=1 // pred_fallthru
      _
    // Predicated region
    $region6: #{actor_forward.1} parent=1 // pred_check
      _
    $region7: #{actor_forward.1} parent=1 // pred_check_branch
      %23 = sbr.rel (0) target = $region9
    $region8: #{actor_forward.1} parent=1 // pred_region
      %s25 = ssub.s32 256, 256
      %26 = vsyncadd [#allocation5], %s25
      %s27 = sshll.u32 [#allocation4], 4
      %s28 = int_to_ptr.vmem [resolvable:$true] %s27
      %33 = dma.hbm_to_vmem [thread:$0]  %s1, 256, %s28, [#allocation5], 128, 128, 8
    $region9: #{actor_forward.1} parent=1 // pred_fallthru
      _
    // Predicated region
    $region10: #{actor_forward.1} parent=1 // pred_check
      _
    $region11: #{actor_forward.1} parent=1 // pred_check_branch
      %35 = sbr.rel (0) target = $region13
    $region12: #{actor_forward.1} parent=1 // pred_region
      %s37 = ssub.s32 10240, 10240
      %38 = vsyncadd [#allocation5], %s37
      %s39 = sshll.u32 [#allocation6], 4
      %s40 = int_to_ptr.vmem [resolvable:$true] %s39
      %45 = dma.hbm_to_vmem [thread:$0]  %s2, 10240, %s40, [#allocation5], 320, 320, 20
    $region13: #{actor_forward.1} parent=1 // pred_fallthru
      _
    // Predicated region
    $region14: #{actor_forward.1} parent=1 // pred_check
      _
    $region15: #{actor_forward.1} parent=1 // pred_check_branch
      %47 = sbr.rel (0) target = $region17
    $region16: #{actor_forward.1} parent=1 // pred_region
      %s49 = ssub.s32 112, 112
      %50 = vsyncadd [#allocation8], %s49
      %s52 = sshll.u32 [#allocation7], 4
      %s53 = int_to_ptr.vmem [resolvable:$true] %s52
      %55 = dma.hbm_to_vmem [thread:$0]  %s3, 112, %s53, [#allocation8]
    $region17: #{actor_forward.1} parent=1 // pred_fallthru
      _
    // Predicated region
    $region18: #{actor_forward.1} parent=1 // pred_check
      _
    $region19: #{actor_forward.1} parent=1 // pred_check_branch
      %57 = sbr.rel (0) target = $region21
    $region20: #{actor_forward.1} parent=1 // pred_region
      %58 = dma.done [#allocation3], 128
    $region21: #{actor_forward.1} parent=1 // pred_fallthru
      _
    // Predicated region
    $region22: #{actor_forward.1} parent=1 // pred_check
      _
    $region23: #{actor_forward.1} parent=1 // pred_check_branch
      %60 = sbr.rel (0) target = $region25
    $region24: #{actor_forward.1} parent=1 // pred_region
      %61 = dma.done [#allocation5], 256
    $region25: #{actor_forward.1} parent=1 // pred_fallthru
      _
    // Predicated region
    $region26: #{actor_forward.1} parent=1 // pred_check
      _
    $region27: #{actor_forward.1} parent=1 // pred_check_branch
      %63 = sbr.rel (0) target = $region29
    $region28: #{actor_forward.1} parent=1 // pred_region
      %64 = dma.done [#allocation5], 10240
    $region29: #{actor_forward.1} parent=1 // pred_fallthru
      _
    // Predicated region
    $region30: #{actor_forward.1} parent=1 // pred_check
      _
    $region31: #{actor_forward.1} parent=1 // pred_check_branch
      %66 = sbr.rel (0) target = $region33
    $region32: #{actor_forward.1} parent=1 // pred_region
      %67 = dma.done [#allocation8], 112
    $region33: #{actor_forward.1} parent=1 // pred_fallthru
      _
    %v69 = vld [vmem:[#allocation2] sm:$0xff]
    %v70 = vpack.c.bf16 %v69, %v69
    %v71 = vld [vmem:[#allocation4] sm:$0xff]
    %v72 = vld [vmem:[#allocation4 + $0x8] sm:$0xff]
    %v73 = vld [vmem:[#allocation7] sm:$0x3]
    %v75 = vlaneseq
    %v76 = vshrl.u32 %v75, 7
    %v77 = vsub.s32 0, %v76
    %v78 = vrot.slane %v73, %v77
    %v79 = vlaneseq
    %v80 = vshrl.u32 %v79, 7
    %v81 = vsub.s32 1, %v80
    %v82 = vrot.slane %v73, %v81
    %v87 = vunpack.c.l.b16 %v71
    %v88 = vunpack.c.h.b16 %v71
    %v89 = vunpack.c.l.b16 %v72
    %v90 = vunpack.c.h.b16 %v72
    %v91 = vpack.c.b16 %v89, %v87
    %v92 = vpack.c.b16 %v90, %v88
    %vm95 = vcmask 130048
    %v97 = vsel %vm95, %v70, 0
    %99 = vmatprep.subr.bf16.mxu0 0
    %100 = vmatpush1.bf16.msra.mxu0 0
    %101 = vmatprep.subr.bf16.mxu0 0
    %102 = vmatpush1.bf16.msra.mxu0 0
    %103 = vmatprep.subr.bf16.mxu0 0
    %104 = vmatpush1.bf16.msra.mxu0 0
    %105 = vmatprep.subr.bf16.mxu0 0
    %106 = vmatpush1.bf16.msra.mxu0 0
    %107 = vmatprep.subr.bf16.mxu0 0
    %108 = vmatpush1.bf16.msra.mxu0 0
    %109 = vmatprep.subr.bf16.mxu0 0
    %110 = vmatpush1.bf16.msra.mxu0 0
    %111 = vmatprep.subr.bf16.mxu0 0
    %112 = vmatpush1.bf16.msra.mxu0 0
    %113 = vmatprep.subr.bf16.mxu0 %v92
    %114 = vmatpush1.bf16.msra.mxu0 %v91
    %115 = vmatprep.subr.bf16.mxu0 0
    %116 = vmatpush2.bf16.msra.mxu0 0
    %117 = vmatprep.subr.bf16.mxu0 0
    %118 = vmatpush2.bf16.msra.mxu0 0
    %119 = vmatprep.subr.bf16.mxu0 0
    %120 = vmatpush2.bf16.msra.mxu0 0
    %121 = vmatprep.subr.bf16.mxu0 0
    %122 = vmatpush2.bf16.msra.mxu0 0
    %123 = vmatprep.subr.bf16.mxu0 0
    %124 = vmatpush2.bf16.msra.mxu0 0
    %125 = vmatprep.subr.bf16.mxu0 0
    %126 = vmatpush2.bf16.msra.mxu0 0
    %127 = vmatprep.subr.bf16.mxu0 0
    %128 = vmatpush2.bf16.msra.mxu0 0
    %129 = vmatprep.subr.bf16.mxu0 0
    %130 = vmatpush2.bf16.msra.mxu0 0
    %131 = vmatprep.mubr.bf16.mxu0 0
    %132 = vmatmul.mubr.bf16.gmra.mxu0 %v97
    %v133 = vpop.f32.mrf.mxu0
    %v134 = vadd.f32 %v78, %v133
    %v135 = vpop.f32.mrf.mxu0
    %v136 = vadd.f32 %v82, %v135
    %v137 = vpop.f32.mrf.mxu0
    %v138 = vpop.f32.mrf.mxu0
    %139 = vdwg.mxu0
    %v140 = vmax.f32 %v134, 0.0
    %v141 = vmax.f32 %v136, 0.0
    %v142 = vpack.c.bf16 %v140, %v140
    %v143 = vpack.c.bf16 %v141, %v141
    %v144 = vld [vmem:[#allocation6] sm:$0xff]
    %v145 = vld [vmem:[#allocation6 + $0x14] sm:$0xff]
    %v146 = vld [vmem:[#allocation6 + $0x28] sm:$0xff]
    %v147 = vld [vmem:[#allocation6 + $0x3c] sm:$0xff]
    %v148 = vld [vmem:[#allocation6 + $0x50] sm:$0xff]
    %v149 = vld [vmem:[#allocation6 + $0x64] sm:$0xff]
    %v150 = vld [vmem:[#allocation6 + $0x78] sm:$0xff]
    %v151 = vld [vmem:[#allocation6 + $0x8c] sm:$0xff]
    %v152 = vld [vmem:[#allocation6 + $0xa0] sm:$0xff]
    %v153 = vld [vmem:[#allocation6 + $0xb4] sm:$0xff]
    %v154 = vld [vmem:[#allocation6 + $0xc8] sm:$0xff]
    %v155 = vld [vmem:[#allocation6 + $0xdc] sm:$0xff]
    %v156 = vld [vmem:[#allocation6 + $0xf0] sm:$0xff]
    %v157 = vld [vmem:[#allocation6 + $0x104] sm:$0xff]
    %v158 = vld [vmem:[#allocation6 + $0x118] sm:$0xff]
    %v159 = vld [vmem:[#allocation6 + $0x12c] sm:$0xff]
    %v160 = vld [vmem:[#allocation6 + $0x140] sm:$0xff]
    %v161 = vld [vmem:[#allocation6 + $0x154] sm:$0xff]
    %v162 = vld [vmem:[#allocation6 + $0x168] sm:$0xff]
    %v163 = vld [vmem:[#allocation6 + $0x17c] sm:$0xff]
    %v164 = vld [vmem:[#allocation6 + $0x190] sm:$0xff]
    %v165 = vld [vmem:[#allocation6 + $0x1a4] sm:$0xff]
    %v166 = vld [vmem:[#allocation6 + $0x1b8] sm:$0xff]
    %v167 = vld [vmem:[#allocation6 + $0x1cc] sm:$0xff]
    %v168 = vld [vmem:[#allocation6 + $0x1e0] sm:$0xff]
    %v169 = vld [vmem:[#allocation6 + $0x1f4] sm:$0xff]
    %v170 = vld [vmem:[#allocation6 + $0x208] sm:$0xff]
    %v171 = vld [vmem:[#allocation6 + $0x21c] sm:$0xff]
    %v172 = vld [vmem:[#allocation6 + $0x230] sm:$0xff]
    %v173 = vld [vmem:[#allocation6 + $0x244] sm:$0xff]
    %v174 = vld [vmem:[#allocation6 + $0x258] sm:$0xff]
    %v175 = vld [vmem:[#allocation6 + $0x26c] sm:$0xff]
    %v176 = vld [vmem:[#allocation7 + $0x2] sm:$0x3]
    %v178 = vlaneseq
    %v179 = vshrl.u32 %v178, 7
    %v180 = vsub.s32 0, %v179
    %v181 = vrot.slane %v176, %v180
    %v182 = vlaneseq
    %v183 = vshrl.u32 %v182, 7
    %v184 = vsub.s32 1, %v183
    %v185 = vrot.slane %v176, %v184
    %v220 = vunpack.c.l.b16 %v144
    %v221 = vunpack.c.h.b16 %v144
    %v222 = vunpack.c.l.b16 %v145
    %v223 = vunpack.c.h.b16 %v145
    %v224 = vunpack.c.l.b16 %v146
    %v225 = vunpack.c.h.b16 %v146
    %v226 = vunpack.c.l.b16 %v147
    %v227 = vunpack.c.h.b16 %v147
    %v228 = vunpack.c.l.b16 %v148
    %v229 = vunpack.c.h.b16 %v148
    %v230 = vunpack.c.l.b16 %v149
    %v231 = vunpack.c.h.b16 %v149
    %v232 = vunpack.c.l.b16 %v150
    %v233 = vunpack.c.h.b16 %v150
    %v234 = vunpack.c.l.b16 %v151
    %v235 = vunpack.c.h.b16 %v151
    %v236 = vunpack.c.l.b16 %v152
    %v237 = vunpack.c.h.b16 %v152
    %v238 = vunpack.c.l.b16 %v153
    %v239 = vunpack.c.h.b16 %v153
    %v240 = vunpack.c.l.b16 %v154
    %v241 = vunpack.c.h.b16 %v154
    %v242 = vunpack.c.l.b16 %v155
    %v243 = vunpack.c.h.b16 %v155
    %v244 = vunpack.c.l.b16 %v156
    %v245 = vunpack.c.h.b16 %v156
    %v246 = vunpack.c.l.b16 %v157
    %v247 = vunpack.c.h.b16 %v157
    %v248 = vunpack.c.l.b16 %v158
    %v249 = vunpack.c.h.b16 %v158
    %v250 = vunpack.c.l.b16 %v159
    %v251 = vunpack.c.h.b16 %v159
    %v252 = vunpack.c.l.b16 %v160
    %v253 = vunpack.c.h.b16 %v160
    %v254 = vunpack.c.l.b16 %v161
    %v255 = vunpack.c.h.b16 %v161
    %v256 = vunpack.c.l.b16 %v162
    %v257 = vunpack.c.h.b16 %v162
    %v258 = vunpack.c.l.b16 %v163
    %v259 = vunpack.c.h.b16 %v163
    %v260 = vunpack.c.l.b16 %v164
    %v261 = vunpack.c.h.b16 %v164
    %v262 = vunpack.c.l.b16 %v165
    %v263 = vunpack.c.h.b16 %v165
    %v264 = vunpack.c.l.b16 %v166
    %v265 = vunpack.c.h.b16 %v166
    %v266 = vunpack.c.l.b16 %v167
    %v267 = vunpack.c.h.b16 %v167
    %v268 = vunpack.c.l.b16 %v168
    %v269 = vunpack.c.h.b16 %v168
    %v270 = vunpack.c.l.b16 %v169
    %v271 = vunpack.c.h.b16 %v169
    %v272 = vunpack.c.l.b16 %v170
    %v273 = vunpack.c.h.b16 %v170
    %v274 = vunpack.c.l.b16 %v171
    %v275 = vunpack.c.h.b16 %v171
    %v276 = vunpack.c.l.b16 %v172
    %v277 = vunpack.c.h.b16 %v172
    %v278 = vunpack.c.l.b16 %v173
    %v279 = vunpack.c.h.b16 %v173
    %v280 = vunpack.c.l.b16 %v174
    %v281 = vunpack.c.h.b16 %v174
    %v282 = vunpack.c.l.b16 %v175
    %v283 = vunpack.c.h.b16 %v175
    %v284 = vpack.c.b16 %v222, %v220
    %v285 = vpack.c.b16 %v223, %v221
    %v286 = vpack.c.b16 %v226, %v224
    %v287 = vpack.c.b16 %v227, %v225
    %v288 = vpack.c.b16 %v230, %v228
    %v289 = vpack.c.b16 %v231, %v229
    %v290 = vpack.c.b16 %v234, %v232
    %v291 = vpack.c.b16 %v235, %v233
    %v292 = vpack.c.b16 %v238, %v236
    %v293 = vpack.c.b16 %v239, %v237
    %v294 = vpack.c.b16 %v242, %v240
    %v295 = vpack.c.b16 %v243, %v241
    %v296 = vpack.c.b16 %v246, %v244
    %v297 = vpack.c.b16 %v247, %v245
    %v298 = vpack.c.b16 %v250, %v248
    %v299 = vpack.c.b16 %v251, %v249
    %v300 = vpack.c.b16 %v254, %v252
    %v301 = vpack.c.b16 %v255, %v253
    %v302 = vpack.c.b16 %v258, %v256
    %v303 = vpack.c.b16 %v259, %v257
    %v304 = vpack.c.b16 %v262, %v260
    %v305 = vpack.c.b16 %v263, %v261
    %v306 = vpack.c.b16 %v266, %v264
    %v307 = vpack.c.b16 %v267, %v265
    %v308 = vpack.c.b16 %v270, %v268
    %v309 = vpack.c.b16 %v271, %v269
    %v310 = vpack.c.b16 %v274, %v272
    %v311 = vpack.c.b16 %v275, %v273
    %v312 = vpack.c.b16 %v278, %v276
    %v313 = vpack.c.b16 %v279, %v277
    %v314 = vpack.c.b16 %v282, %v280
    %v315 = vpack.c.b16 %v283, %v281
    %348 = vmatprep.subr.bf16.mxu0 %v299
    %349 = vmatpush1.bf16.msra.mxu0 %v298
    %350 = vmatprep.subr.bf16.mxu0 %v297
    %351 = vmatpush1.bf16.msra.mxu0 %v296
    %352 = vmatprep.subr.bf16.mxu0 %v295
    %353 = vmatpush1.bf16.msra.mxu0 %v294
    %354 = vmatprep.subr.bf16.mxu0 %v293
    %355 = vmatpush1.bf16.msra.mxu0 %v292
    %356 = vmatprep.subr.bf16.mxu0 %v291
    %357 = vmatpush1.bf16.msra.mxu0 %v290
    %358 = vmatprep.subr.bf16.mxu0 %v289
    %359 = vmatpush1.bf16.msra.mxu0 %v288
    %360 = vmatprep.subr.bf16.mxu0 %v287
    %361 = vmatpush1.bf16.msra.mxu0 %v286
    %362 = vmatprep.subr.bf16.mxu0 %v285
    %363 = vmatpush1.bf16.msra.mxu0 %v284
    %364 = vmatprep.subr.bf16.mxu0 %v315
    %365 = vmatpush2.bf16.msra.mxu0 %v314
    %366 = vmatprep.subr.bf16.mxu0 %v313
    %367 = vmatpush2.bf16.msra.mxu0 %v312
    %368 = vmatprep.subr.bf16.mxu0 %v311
    %369 = vmatpush2.bf16.msra.mxu0 %v310
    %370 = vmatprep.subr.bf16.mxu0 %v309
    %371 = vmatpush2.bf16.msra.mxu0 %v308
    %372 = vmatprep.subr.bf16.mxu0 %v307
    %373 = vmatpush2.bf16.msra.mxu0 %v306
    %374 = vmatprep.subr.bf16.mxu0 %v305
    %375 = vmatpush2.bf16.msra.mxu0 %v304
    %376 = vmatprep.subr.bf16.mxu0 %v303
    %377 = vmatpush2.bf16.msra.mxu0 %v302
    %378 = vmatprep.subr.bf16.mxu0 %v301
    %379 = vmatpush2.bf16.msra.mxu0 %v300
    %380 = vmatprep.mubr.bf16.mxu0 %v143
    %381 = vmatmul.mubr.bf16.gmra.mxu0 %v142
    %v382 = vpop.f32.mrf.mxu0
    %v383 = vadd.f32 %v181, %v382
    %v384 = vpop.f32.mrf.mxu0
    %v385 = vadd.f32 %v185, %v384
    %v386 = vpop.f32.mrf.mxu0
    %v387 = vpop.f32.mrf.mxu0
    %388 = vdwg.mxu0
    %v389 = vmax.f32 %v383, 0.0
    %v390 = vmax.f32 %v385, 0.0
    %v391 = vpack.c.bf16 %v389, %v389
    %v392 = vpack.c.bf16 %v390, %v390
    %v393 = vld [vmem:[#allocation6 + $0x8] sm:$0xff]
    %v394 = vld [vmem:[#allocation6 + $0x1c] sm:$0xff]
    %v395 = vld [vmem:[#allocation6 + $0x30] sm:$0xff]
    %v396 = vld [vmem:[#allocation6 + $0x44] sm:$0xff]
    %v397 = vld [vmem:[#allocation6 + $0x58] sm:$0xff]
    %v398 = vld [vmem:[#allocation6 + $0x6c] sm:$0xff]
    %v399 = vld [vmem:[#allocation6 + $0x80] sm:$0xff]
    %v400 = vld [vmem:[#allocation6 + $0x94] sm:$0xff]
    %v401 = vld [vmem:[#allocation6 + $0xa8] sm:$0xff]
    %v402 = vld [vmem:[#allocation6 + $0xbc] sm:$0xff]
    %v403 = vld [vmem:[#allocation6 + $0xd0] sm:$0xff]
    %v404 = vld [vmem:[#allocation6 + $0xe4] sm:$0xff]
    %v405 = vld [vmem:[#allocation6 + $0xf8] sm:$0xff]
    %v406 = vld [vmem:[#allocation6 + $0x10c] sm:$0xff]
    %v407 = vld [vmem:[#allocation6 + $0x120] sm:$0xff]
    %v408 = vld [vmem:[#allocation6 + $0x134] sm:$0xff]
    %v409 = vld [vmem:[#allocation6 + $0x148] sm:$0xff]
    %v410 = vld [vmem:[#allocation6 + $0x15c] sm:$0xff]
    %v411 = vld [vmem:[#allocation6 + $0x170] sm:$0xff]
    %v412 = vld [vmem:[#allocation6 + $0x184] sm:$0xff]
    %v413 = vld [vmem:[#allocation6 + $0x198] sm:$0xff]
    %v414 = vld [vmem:[#allocation6 + $0x1ac] sm:$0xff]
    %v415 = vld [vmem:[#allocation6 + $0x1c0] sm:$0xff]
    %v416 = vld [vmem:[#allocation6 + $0x1d4] sm:$0xff]
    %v417 = vld [vmem:[#allocation6 + $0x1e8] sm:$0xff]
    %v418 = vld [vmem:[#allocation6 + $0x1fc] sm:$0xff]
    %v419 = vld [vmem:[#allocation6 + $0x210] sm:$0xff]
    %v420 = vld [vmem:[#allocation6 + $0x224] sm:$0xff]
    %v421 = vld [vmem:[#allocation6 + $0x238] sm:$0xff]
    %v422 = vld [vmem:[#allocation6 + $0x24c] sm:$0xff]
    %v423 = vld [vmem:[#allocation6 + $0x260] sm:$0xff]
    %v424 = vld [vmem:[#allocation6 + $0x274] sm:$0xff]
    %v425 = vld [vmem:[#allocation7 + $0x4] sm:$0x3]
    %v427 = vlaneseq
    %v428 = vshrl.u32 %v427, 7
    %v429 = vsub.s32 0, %v428
    %v430 = vrot.slane %v425, %v429
    %v431 = vlaneseq
    %v432 = vshrl.u32 %v431, 7
    %v433 = vsub.s32 1, %v432
    %v434 = vrot.slane %v425, %v433
    %v469 = vunpack.c.l.b16 %v393
    %v470 = vunpack.c.h.b16 %v393
    %v471 = vunpack.c.l.b16 %v394
    %v472 = vunpack.c.h.b16 %v394
    %v473 = vunpack.c.l.b16 %v395
    %v474 = vunpack.c.h.b16 %v395
    %v475 = vunpack.c.l.b16 %v396
    %v476 = vunpack.c.h.b16 %v396
    %v477 = vunpack.c.l.b16 %v397
    %v478 = vunpack.c.h.b16 %v397
    %v479 = vunpack.c.l.b16 %v398
    %v480 = vunpack.c.h.b16 %v398
    %v481 = vunpack.c.l.b16 %v399
    %v482 = vunpack.c.h.b16 %v399
    %v483 = vunpack.c.l.b16 %v400
    %v484 = vunpack.c.h.b16 %v400
    %v485 = vunpack.c.l.b16 %v401
    %v486 = vunpack.c.h.b16 %v401
    %v487 = vunpack.c.l.b16 %v402
    %v488 = vunpack.c.h.b16 %v402
    %v489 = vunpack.c.l.b16 %v403
    %v490 = vunpack.c.h.b16 %v403
    %v491 = vunpack.c.l.b16 %v404
    %v492 = vunpack.c.h.b16 %v404
    %v493 = vunpack.c.l.b16 %v405
    %v494 = vunpack.c.h.b16 %v405
    %v495 = vunpack.c.l.b16 %v406
    %v496 = vunpack.c.h.b16 %v406
    %v497 = vunpack.c.l.b16 %v407
    %v498 = vunpack.c.h.b16 %v407
    %v499 = vunpack.c.l.b16 %v408
    %v500 = vunpack.c.h.b16 %v408
    %v501 = vunpack.c.l.b16 %v409
    %v502 = vunpack.c.h.b16 %v409
    %v503 = vunpack.c.l.b16 %v410
    %v504 = vunpack.c.h.b16 %v410
    %v505 = vunpack.c.l.b16 %v411
    %v506 = vunpack.c.h.b16 %v411
    %v507 = vunpack.c.l.b16 %v412
    %v508 = vunpack.c.h.b16 %v412
    %v509 = vunpack.c.l.b16 %v413
    %v510 = vunpack.c.h.b16 %v413
    %v511 = vunpack.c.l.b16 %v414
    %v512 = vunpack.c.h.b16 %v414
    %v513 = vunpack.c.l.b16 %v415
    %v514 = vunpack.c.h.b16 %v415
    %v515 = vunpack.c.l.b16 %v416
    %v516 = vunpack.c.h.b16 %v416
    %v517 = vunpack.c.l.b16 %v417
    %v518 = vunpack.c.h.b16 %v417
    %v519 = vunpack.c.l.b16 %v418
    %v520 = vunpack.c.h.b16 %v418
    %v521 = vunpack.c.l.b16 %v419
    %v522 = vunpack.c.h.b16 %v419
    %v523 = vunpack.c.l.b16 %v420
    %v524 = vunpack.c.h.b16 %v420
    %v525 = vunpack.c.l.b16 %v421
    %v526 = vunpack.c.h.b16 %v421
    %v527 = vunpack.c.l.b16 %v422
    %v528 = vunpack.c.h.b16 %v422
    %v529 = vunpack.c.l.b16 %v423
    %v530 = vunpack.c.h.b16 %v423
    %v531 = vunpack.c.l.b16 %v424
    %v532 = vunpack.c.h.b16 %v424
    %v533 = vpack.c.b16 %v471, %v469
    %v534 = vpack.c.b16 %v472, %v470
    %v535 = vpack.c.b16 %v475, %v473
    %v536 = vpack.c.b16 %v476, %v474
    %v537 = vpack.c.b16 %v479, %v477
    %v538 = vpack.c.b16 %v480, %v478
    %v539 = vpack.c.b16 %v483, %v481
    %v540 = vpack.c.b16 %v484, %v482
    %v541 = vpack.c.b16 %v487, %v485
    %v542 = vpack.c.b16 %v488, %v486
    %v543 = vpack.c.b16 %v491, %v489
    %v544 = vpack.c.b16 %v492, %v490
    %v545 = vpack.c.b16 %v495, %v493
    %v546 = vpack.c.b16 %v496, %v494
    %v547 = vpack.c.b16 %v499, %v497
    %v548 = vpack.c.b16 %v500, %v498
    %v549 = vpack.c.b16 %v503, %v501
    %v550 = vpack.c.b16 %v504, %v502
    %v551 = vpack.c.b16 %v507, %v505
    %v552 = vpack.c.b16 %v508, %v506
    %v553 = vpack.c.b16 %v511, %v509
    %v554 = vpack.c.b16 %v512, %v510
    %v555 = vpack.c.b16 %v515, %v513
    %v556 = vpack.c.b16 %v516, %v514
    %v557 = vpack.c.b16 %v519, %v517
    %v558 = vpack.c.b16 %v520, %v518
    %v559 = vpack.c.b16 %v523, %v521
    %v560 = vpack.c.b16 %v524, %v522
    %v561 = vpack.c.b16 %v527, %v525
    %v562 = vpack.c.b16 %v528, %v526
    %v563 = vpack.c.b16 %v531, %v529
    %v564 = vpack.c.b16 %v532, %v530
    %597 = vmatprep.subr.bf16.mxu0 %v548
    %598 = vmatpush1.bf16.msra.mxu0 %v547
    %599 = vmatprep.subr.bf16.mxu0 %v546
    %600 = vmatpush1.bf16.msra.mxu0 %v545
    %601 = vmatprep.subr.bf16.mxu0 %v544
    %602 = vmatpush1.bf16.msra.mxu0 %v543
    %603 = vmatprep.subr.bf16.mxu0 %v542
    %604 = vmatpush1.bf16.msra.mxu0 %v541
    %605 = vmatprep.subr.bf16.mxu0 %v540
    %606 = vmatpush1.bf16.msra.mxu0 %v539
    %607 = vmatprep.subr.bf16.mxu0 %v538
    %608 = vmatpush1.bf16.msra.mxu0 %v537
    %609 = vmatprep.subr.bf16.mxu0 %v536
    %610 = vmatpush1.bf16.msra.mxu0 %v535
    %611 = vmatprep.subr.bf16.mxu0 %v534
    %612 = vmatpush1.bf16.msra.mxu0 %v533
    %613 = vmatprep.subr.bf16.mxu0 %v564
    %614 = vmatpush2.bf16.msra.mxu0 %v563
    %615 = vmatprep.subr.bf16.mxu0 %v562
    %616 = vmatpush2.bf16.msra.mxu0 %v561
    %617 = vmatprep.subr.bf16.mxu0 %v560
    %618 = vmatpush2.bf16.msra.mxu0 %v559
    %619 = vmatprep.subr.bf16.mxu0 %v558
    %620 = vmatpush2.bf16.msra.mxu0 %v557
    %621 = vmatprep.subr.bf16.mxu0 %v556
    %622 = vmatpush2.bf16.msra.mxu0 %v555
    %623 = vmatprep.subr.bf16.mxu0 %v554
    %624 = vmatpush2.bf16.msra.mxu0 %v553
    %625 = vmatprep.subr.bf16.mxu0 %v552
    %626 = vmatpush2.bf16.msra.mxu0 %v551
    %627 = vmatprep.subr.bf16.mxu0 %v550
    %628 = vmatpush2.bf16.msra.mxu0 %v549
    %629 = vmatprep.mubr.bf16.mxu0 %v392
    %630 = vmatmul.mubr.bf16.gmra.mxu0 %v391
    %v631 = vpop.f32.mrf.mxu0
    %v632 = vadd.f32 %v430, %v631
    %v633 = vpop.f32.mrf.mxu0
    %v634 = vadd.f32 %v434, %v633
    %v635 = vpop.f32.mrf.mxu0
    %v636 = vpop.f32.mrf.mxu0
    %637 = vdwg.mxu0
    %v638 = vmax.f32 %v632, 0.0
    %v639 = vmax.f32 %v634, 0.0
    %v640 = vpack.c.bf16 %v638, %v638
    %v641 = vpack.c.bf16 %v639, %v639
    %v642 = vld [vmem:[#allocation6 + $0x10] sm:$0xf]
    %v643 = vld [vmem:[#allocation6 + $0x24] sm:$0xf]
    %v644 = vld [vmem:[#allocation6 + $0x38] sm:$0xf]
    %v645 = vld [vmem:[#allocation6 + $0x4c] sm:$0xf]
    %v646 = vld [vmem:[#allocation6 + $0x60] sm:$0xf]
    %v647 = vld [vmem:[#allocation6 + $0x74] sm:$0xf]
    %v648 = vld [vmem:[#allocation6 + $0x88] sm:$0xf]
    %v649 = vld [vmem:[#allocation6 + $0x9c] sm:$0xf]
    %v650 = vld [vmem:[#allocation6 + $0xb0] sm:$0xf]
    %v651 = vld [vmem:[#allocation6 + $0xc4] sm:$0xf]
    %v652 = vld [vmem:[#allocation6 + $0xd8] sm:$0xf]
    %v653 = vld [vmem:[#allocation6 + $0xec] sm:$0xf]
    %v654 = vld [vmem:[#allocation6 + $0x100] sm:$0xf]
    %v655 = vld [vmem:[#allocation6 + $0x114] sm:$0xf]
    %v656 = vld [vmem:[#allocation6 + $0x128] sm:$0xf]
    %v657 = vld [vmem:[#allocation6 + $0x13c] sm:$0xf]
    %v658 = vld [vmem:[#allocation6 + $0x150] sm:$0xf]
    %v659 = vld [vmem:[#allocation6 + $0x164] sm:$0xf]
    %v660 = vld [vmem:[#allocation6 + $0x178] sm:$0xf]
    %v661 = vld [vmem:[#allocation6 + $0x18c] sm:$0xf]
    %v662 = vld [vmem:[#allocation6 + $0x1a0] sm:$0xf]
    %v663 = vld [vmem:[#allocation6 + $0x1b4] sm:$0xf]
    %v664 = vld [vmem:[#allocation6 + $0x1c8] sm:$0xf]
    %v665 = vld [vmem:[#allocation6 + $0x1dc] sm:$0xf]
    %v666 = vld [vmem:[#allocation6 + $0x1f0] sm:$0xf]
    %v667 = vld [vmem:[#allocation6 + $0x204] sm:$0xf]
    %v668 = vld [vmem:[#allocation6 + $0x218] sm:$0xf]
    %v669 = vld [vmem:[#allocation6 + $0x22c] sm:$0xf]
    %v670 = vld [vmem:[#allocation6 + $0x240] sm:$0xf]
    %v671 = vld [vmem:[#allocation6 + $0x254] sm:$0xf]
    %v672 = vld [vmem:[#allocation6 + $0x268] sm:$0xf]
    %v673 = vld [vmem:[#allocation6 + $0x27c] sm:$0xf]
    %v674 = vld [vmem:[#allocation7 + $0x6] sm:$0x1]
    %v676 = vlaneseq
    %v677 = vshrl.u32 %v676, 7
    %v678 = vsub.s32 0, %v677
    %v679 = vrot.slane %v674, %v678
    %v713 = vunpack.c.l.b16 %v642
    %v714 = vunpack.c.l.b16 %v643
    %v715 = vunpack.c.l.b16 %v644
    %v716 = vunpack.c.l.b16 %v645
    %v717 = vunpack.c.l.b16 %v646
    %v718 = vunpack.c.l.b16 %v647
    %v719 = vunpack.c.l.b16 %v648
    %v720 = vunpack.c.l.b16 %v649
    %v721 = vunpack.c.l.b16 %v650
    %v722 = vunpack.c.l.b16 %v651
    %v723 = vunpack.c.l.b16 %v652
    %v724 = vunpack.c.l.b16 %v653
    %v725 = vunpack.c.l.b16 %v654
    %v726 = vunpack.c.l.b16 %v655
    %v727 = vunpack.c.l.b16 %v656
    %v728 = vunpack.c.l.b16 %v657
    %v729 = vunpack.c.l.b16 %v658
    %v730 = vunpack.c.l.b16 %v659
    %v731 = vunpack.c.l.b16 %v660
    %v732 = vunpack.c.l.b16 %v661
    %v733 = vunpack.c.l.b16 %v662
    %v734 = vunpack.c.l.b16 %v663
    %v735 = vunpack.c.l.b16 %v664
    %v736 = vunpack.c.l.b16 %v665
    %v737 = vunpack.c.l.b16 %v666
    %v738 = vunpack.c.l.b16 %v667
    %v739 = vunpack.c.l.b16 %v668
    %v740 = vunpack.c.l.b16 %v669
    %v741 = vunpack.c.l.b16 %v670
    %v742 = vunpack.c.l.b16 %v671
    %v743 = vunpack.c.l.b16 %v672
    %v744 = vunpack.c.l.b16 %v673
    %v745 = vpack.c.b16 %v714, %v713
    %v746 = vpack.c.b16 %v716, %v715
    %v747 = vpack.c.b16 %v718, %v717
    %v748 = vpack.c.b16 %v720, %v719
    %v749 = vpack.c.b16 %v722, %v721
    %v750 = vpack.c.b16 %v724, %v723
    %v751 = vpack.c.b16 %v726, %v725
    %v752 = vpack.c.b16 %v728, %v727
    %v753 = vpack.c.b16 %v730, %v729
    %v754 = vpack.c.b16 %v732, %v731
    %v755 = vpack.c.b16 %v734, %v733
    %v756 = vpack.c.b16 %v736, %v735
    %v757 = vpack.c.b16 %v738, %v737
    %v758 = vpack.c.b16 %v740, %v739
    %v759 = vpack.c.b16 %v742, %v741
    %v760 = vpack.c.b16 %v744, %v743
    %777 = vmatprep.subr.bf16.mxu0 0
    %778 = vmatpush1.bf16.msra.mxu0 %v752
    %779 = vmatprep.subr.bf16.mxu0 0
    %780 = vmatpush1.bf16.msra.mxu0 %v751
    %781 = vmatprep.subr.bf16.mxu0 0
    %782 = vmatpush1.bf16.msra.mxu0 %v750
    %783 = vmatprep.subr.bf16.mxu0 0
    %784 = vmatpush1.bf16.msra.mxu0 %v749
    %785 = vmatprep.subr.bf16.mxu0 0
    %786 = vmatpush1.bf16.msra.mxu0 %v748
    %787 = vmatprep.subr.bf16.mxu0 0
    %788 = vmatpush1.bf16.msra.mxu0 %v747
    %789 = vmatprep.subr.bf16.mxu0 0
    %790 = vmatpush1.bf16.msra.mxu0 %v746
    %791 = vmatprep.subr.bf16.mxu0 0
    %792 = vmatpush1.bf16.msra.mxu0 %v745
    %793 = vmatprep.subr.bf16.mxu0 0
    %794 = vmatpush2.bf16.msra.mxu0 %v760
    %795 = vmatprep.subr.bf16.mxu0 0
    %796 = vmatpush2.bf16.msra.mxu0 %v759
    %797 = vmatprep.subr.bf16.mxu0 0
    %798 = vmatpush2.bf16.msra.mxu0 %v758
    %799 = vmatprep.subr.bf16.mxu0 0
    %800 = vmatpush2.bf16.msra.mxu0 %v757
    %801 = vmatprep.subr.bf16.mxu0 0
    %802 = vmatpush2.bf16.msra.mxu0 %v756
    %803 = vmatprep.subr.bf16.mxu0 0
    %804 = vmatpush2.bf16.msra.mxu0 %v755
    %805 = vmatprep.subr.bf16.mxu0 0
    %806 = vmatpush2.bf16.msra.mxu0 %v754
    %807 = vmatprep.subr.bf16.mxu0 0
    %808 = vmatpush2.bf16.msra.mxu0 %v753
    %809 = vmatprep.mubr.bf16.mxu0 %v641
    %810 = vmatmul.mubr.bf16.gmra.mxu0 %v640
    %v811 = vpop.f32.mrf.mxu0
    %v812 = vadd.f32 %v679, %v811
    %v813 = vpop.f32.mrf.mxu0
    %v814 = vpop.f32.mrf.mxu0
    %v815 = vpop.f32.mrf.mxu0
    %816 = vdwg.mxu0
    %v817 = vlaneseq
    %v818 = vand.u32 %v817, 127
    %vm819 = vcmp.lt.s32.totalorder %v818, 8
    %v820 = vmax.f32 %v812, -20.0
    %v821 = vmin.f32 %v820, 2.0
    %v822 = vsel %vm819, %v812, %v821
    %823 = vst [vmem:[%s4] sm:$0xff] %v822
    // Predicated region
    $region34: #{actor_forward.1} parent=1 // pred_check
      _
    $region35: #{actor_forward.1} parent=1 // pred_check_branch
      %825 = sbr.rel (0) target = $region37
    $region36: #{actor_forward.1} parent=1 // pred_region
      _
    $region37: #{actor_forward.1} parent=1 // pred_fallthru
      _
    // Predicated region
    $region38: #{actor_forward.1} parent=1 // pred_check
      _
    $region39: #{actor_forward.1} parent=1 // pred_check_branch
      %827 = sbr.rel (0) target = $region41
    $region40: #{actor_forward.1} parent=1 // pred_region
      _
    $region41: #{actor_forward.1} parent=1 // pred_fallthru
      _
    %828 = vsyncpa [#allocation3], 1
    %829 = vsyncpa [#allocation5], 1
    %830 = vsyncpa [#allocation8], 1

</llo_original>
